<compile_context>
chip_gen: v7x
topology: tpu7x:2x2x1
jax: 0.10.0
libtpu: 0.0.40
codegen_flags: <defaults>
</compile_context>

<pallas_src>
import functools

import jax
import jax.numpy as jnp
import numpy as np
from jax.experimental import pallas as pl
from jax.experimental.pallas import tpu as pltpu

EPS = 1e-5  # PyTorch GroupNorm default


# --------------------------------------------------------------------------------------
# Pallas kernel: conv-as-matmul + bias + Mish + GroupNorm (groups == channels)
# --------------------------------------------------------------------------------------
def conv_pool_kernel(pT_ref, wT_ref, par_ref, o_ref):
    # pT_ref : (K, NB*P)   im2col patches for one batch tile (channel-major columns)
    # wT_ref : (C_out, K)  flattened conv weight, row-major (ci, kh, kw)
    # par_ref: (C_out, 3)  columns = [bias, gamma, beta]
    # o_ref  : (NB, C_out, P) channel-major output tile
    nb, c_out, p = o_ref.shape

    par = par_ref[...]
    bias = par[:, 0:1]
    gamma = par[:, 1:2]
    beta = par[:, 2:3]

    # Conv as a single MXU matmul with f32 accumulation: (C_out, K) @ (K, NB*P).
    y = jnp.dot(wT_ref[...], pT_ref[...], preferred_element_type=jnp.float32)
    y = y + bias                                   # (C_out, 1) lane-broadcast

    # Mish: x * tanh(softplus(x)), with a single exp:
    #   tanh(softplus(x)) = ((1+e^x)^2 - 1) / ((1+e^x)^2 + 1)
    # clamp at 40: for x >= 40, tanh(softplus(x)) == 1 in f32 and the clamp avoids overflow.
    t = jnp.exp(jnp.minimum(y, 40.0))
    s = (1.0 + t) * (1.0 + t)
    y = y * ((s - 1.0) / (s + 1.0))

    # GroupNorm with num_groups == num_channels (ch_in == 8): per-sample, per-channel
    # statistics over the spatial axis (lane-axis reduction).  For ch_in > 8 the
    # per-channel moments would additionally be pooled over groups of C//8 channels.
    for n in range(nb):                            # static unroll over the batch tile
        seg = y[:, n * p:(n + 1) * p]              # (C_out, P) static lane slice
        mean = jnp.mean(seg, axis=1, keepdims=True)
        var = jnp.mean(jnp.square(seg - mean), axis=1, keepdims=True)
        out = (seg - mean) * jax.lax.rsqrt(var + EPS) * gamma + beta
        o_ref[n] = out.astype(o_ref.dtype)


# --------------------------------------------------------------------------------------
# Wrapper: im2col glue + pallas_call + (reshape-only) layout restore
# --------------------------------------------------------------------------------------
@functools.partial(jax.jit, static_argnames=())
def conv_pool(x_nchw, w_oihw, bias, gamma, beta):
    N, C, H, W = x_nchw.shape
    C_out = w_oihw.shape[0]
    Ho, Wo = (H + 1) // 2, (W + 1) // 2            # PyTorch Conv2d(k=3, s=2, p=1) output size
    P = Ho * Wo
    K = C * 9

    # Batch tile: largest divisor of N whose double-buffered patch block stays small
    # in VMEM; at these shapes NB == N (single grid step, 128-column matmul).
    NB = 1
    vmem_budget = 4 * 1024 * 1024
    for nb in range(1, N + 1):
        if N % nb == 0 and 2 * nb * P * K * 4 <= vmem_budget:
            NB = nb
    n_tiles = N // NB

    # --- glue: pad + im2col (pure JAX) -> channel-major patch matrix (K, N*P) ---
    xp = jnp.pad(x_nchw, ((0, 0), (0, 0), (1, 1), (1, 1)))
    cols = [xp[:, :, kh:kh + 2 * Ho:2, kw:kw + 2 * Wo:2]      # each (N, C, Ho, Wo)
            for kh in range(3) for kw in range(3)]
    pat = jnp.stack(cols, axis=2)                             # (N, C, 9, Ho, Wo)
    pT = pat.transpose(1, 2, 0, 3, 4).reshape(K, N * P)       # rows ordered (ci, kh, kw)

    wT = w_oihw.reshape(C_out, K)                             # OIHW flatten == (ci, kh, kw)
    params = jnp.stack([bias, gamma, beta], axis=1)           # (C_out, 3)

    cost = pl.CostEstimate(
        flops=2 * C_out * K * N * P + 12 * C_out * N * P,
        transcendentals=2 * C_out * N * P,
        bytes_accessed=4 * (pT.size + wT.size + params.size + N * C_out * P),
    )

    out = pl.pallas_call(
        conv_pool_kernel,
        out_shape=jax.ShapeDtypeStruct((N, C_out, P), x_nchw.dtype),
        grid=(n_tiles,),
        in_specs=[
            pl.BlockSpec((K, NB * P), lambda i: (0, i)),
            pl.BlockSpec((C_out, K), lambda i: (0, 0)),
            pl.BlockSpec((C_out, 3), lambda i: (0, 0)),
        ],
        out_specs=pl.BlockSpec((NB, C_out, P), lambda i: (i, 0, 0)),
        compiler_params=pltpu.CompilerParams(dimension_semantics=("parallel",)),
        cost_estimate=cost,
    )(pT, wT, params)

    # Channel-major kernel output -> NCHW is a pure reshape (no HBM transpose pass).
    return out.reshape(N, C_out, Ho, Wo)


# --------------------------------------------------------------------------------------
# Pure-JAX reference (for correctness check only)
# --------------------------------------------------------------------------------------
def conv_pool_ref(x, w, b, gamma, beta):
    y = jax.lax.conv_general_dilated(
        x, w, window_strides=(2, 2), padding=((1, 1), (1, 1)),
        dimension_numbers=("NCHW", "OIHW", "NCHW"),
    ) + b.reshape(1, -1, 1, 1)
    y = y * jnp.tanh(jax.nn.softplus(y))                      # Mish
    # GroupNorm, 8 groups over 8 channels -> per-channel over (H, W)
    mean = jnp.mean(y, axis=(2, 3), keepdims=True)
    var = jnp.mean(jnp.square(y - mean), axis=(2, 3), keepdims=True)
    y = (y - mean) * jax.lax.rsqrt(var + EPS)
    return y * gamma.reshape(1, -1, 1, 1) + beta.reshape(1, -1, 1, 1)


if __name__ == "__main__":
    # ch_in=8 (divisible by 8 groups), spatial 16x16, batch 2
    N, C, H, W = 2, 8, 16, 16
    key = jax.random.PRNGKey(0)
    kx, kw, kb, kg, kbe = jax.random.split(key, 5)

    x = jax.random.normal(kx, (N, C, H, W), dtype=jnp.float32)
    w = jax.random.normal(kw, (C, C, 3, 3), dtype=jnp.float32) * 0.1    # Conv2d weight (OIHW)
    b = jax.random.normal(kb, (C,), dtype=jnp.float32) * 0.1            # Conv2d bias
    gamma = 1.0 + 0.1 * jax.random.normal(kg, (C,), dtype=jnp.float32)  # GroupNorm weight
    beta = 0.1 * jax.random.normal(kbe, (C,), dtype=jnp.float32)        # GroupNorm bias

    out = jax.block_until_ready(conv_pool(x, w, b, gamma, beta))
    ref = jax.block_until_ready(conv_pool_ref(x, w, b, gamma, beta))

    assert out.shape == (N, C, (H + 1) // 2, (W + 1) // 2), out.shape
    np.testing.assert_allclose(np.asarray(out), np.asarray(ref), rtol=1e-4, atol=1e-4)

    print("KERNEL_OK")
</pallas_src>

<mosaic_0001>
module attributes {stable_mosaic.version = 11 : i64} {
  func.func @conv_pool_kernel(%arg0: i32, %arg1: memref<72x128xf32, #tpu.memory_space<vmem>>, %arg2: memref<8x72xf32, #tpu.memory_space<vmem>>, %arg3: memref<8x3xf32, #tpu.memory_space<vmem>>, %arg4: memref<2x8x64xf32, #tpu.memory_space<vmem>>) attributes {dimension_semantics = [#tpu.dimension_semantics<parallel>], iteration_bounds = array<i64: 1>, scalar_prefetch = 0 : i64, scratch_operands = 0 : i64, tpu.core_type = #tpu.core_type<tc>, window_params = [{transform_indices = @transform_0, window_bounds = array<i64: 72, 128>}, {pipeline_mode = #tpu.pipeline_mode<synchronous>, transform_indices = @transform_1, window_bounds = array<i64: 8, 72>}, {pipeline_mode = #tpu.pipeline_mode<synchronous>, transform_indices = @transform_2, window_bounds = array<i64: 8, 3>}, {transform_indices = @transform_3, window_bounds = array<i64: 2, 8, 64>}]} {
    %c0 = arith.constant 0 : index
    %c0_0 = arith.constant 0 : index
    %0 = vector.load %arg3[%c0, %c0_0] : memref<8x3xf32, #tpu.memory_space<vmem>>, vector<8x3xf32>
    %1 = vector.extract_strided_slice %0 {offsets = [0, 0], sizes = [8, 1], strides = [1, 1]} : vector<8x3xf32> to vector<8x1xf32>
    %2 = vector.extract_strided_slice %0 {offsets = [0, 1], sizes = [8, 1], strides = [1, 1]} : vector<8x3xf32> to vector<8x1xf32>
    %3 = vector.extract_strided_slice %0 {offsets = [0, 2], sizes = [8, 1], strides = [1, 1]} : vector<8x3xf32> to vector<8x1xf32>
    %c0_1 = arith.constant 0 : index
    %c0_2 = arith.constant 0 : index
    %4 = vector.load %arg2[%c0_1, %c0_2] : memref<8x72xf32, #tpu.memory_space<vmem>>, vector<8x72xf32>
    %c0_3 = arith.constant 0 : index
    %c0_4 = arith.constant 0 : index
    %5 = vector.load %arg1[%c0_3, %c0_4] : memref<72x128xf32, #tpu.memory_space<vmem>>, vector<72x128xf32>
    %cst = arith.constant dense<0.000000e+00> : vector<8x128xf32>
    %6 = tpu.matmul %4, %5, %cst {dimension_numbers = #tpu.dot_dimension_numbers<[1], [0], [0], [1], [0, 0, 1, 1], [], []>} : vector<8x72xf32>, vector<72x128xf32>, vector<8x128xf32> -> vector<8x128xf32>
    %7 = vector.broadcast %1 : vector<8x1xf32> to vector<8x128xf32>
    %8 = arith.addf %6, %7 : vector<8x128xf32>
    %cst_5 = arith.constant 4.000000e+01 : f32
    %9 = vector.broadcast %cst_5 : f32 to vector<8x128xf32>
    %10 = arith.minimumf %8, %9 : vector<8x128xf32>
    %11 = math.exp %10 : vector<8x128xf32>
    %cst_6 = arith.constant 1.000000e+00 : f32
    %12 = vector.broadcast %cst_6 : f32 to vector<8x128xf32>
    %13 = arith.addf %12, %11 : vector<8x128xf32>
    %cst_7 = arith.constant 1.000000e+00 : f32
    %14 = vector.broadcast %cst_7 : f32 to vector<8x128xf32>
    %15 = arith.addf %14, %11 : vector<8x128xf32>
    %16 = arith.mulf %13, %15 : vector<8x128xf32>
    %cst_8 = arith.constant 1.000000e+00 : f32
    %17 = vector.broadcast %cst_8 : f32 to vector<8x128xf32>
    %18 = arith.subf %16, %17 : vector<8x128xf32>
    %cst_9 = arith.constant 1.000000e+00 : f32
    %19 = vector.broadcast %cst_9 : f32 to vector<8x128xf32>
    %20 = arith.addf %16, %19 : vector<8x128xf32>
    %21 = arith.divf %18, %20 : vector<8x128xf32>
    %22 = arith.mulf %8, %21 : vector<8x128xf32>
    %23 = vector.extract_strided_slice %22 {offsets = [0, 0], sizes = [8, 64], strides = [1, 1]} : vector<8x128xf32> to vector<8x64xf32>
    %cst_10 = arith.constant dense<0.000000e+00> : vector<8xf32>
    %24 = vector.multi_reduction <add>, %23, %cst_10 [1] : vector<8x64xf32> to vector<8xf32>
    %25 = vector.shape_cast %24 : vector<8xf32> to vector<8x1xf32>
    %cst_11 = arith.constant 6.400000e+01 : f32
    %26 = vector.broadcast %cst_11 : f32 to vector<8x1xf32>
    %27 = arith.divf %25, %26 : vector<8x1xf32>
    %28 = vector.broadcast %27 : vector<8x1xf32> to vector<8x64xf32>
    %29 = arith.subf %23, %28 : vector<8x64xf32>
    %30 = arith.mulf %29, %29 : vector<8x64xf32>
    %cst_12 = arith.constant dense<0.000000e+00> : vector<8xf32>
    %31 = vector.multi_reduction <add>, %30, %cst_12 [1] : vector<8x64xf32> to vector<8xf32>
    %32 = vector.shape_cast %31 : vector<8xf32> to vector<8x1xf32>
    %cst_13 = arith.constant 6.400000e+01 : f32
    %33 = vector.broadcast %cst_13 : f32 to vector<8x1xf32>
    %34 = arith.divf %32, %33 : vector<8x1xf32>
    %35 = vector.broadcast %27 : vector<8x1xf32> to vector<8x64xf32>
    %36 = arith.subf %23, %35 : vector<8x64xf32>
    %cst_14 = arith.constant 9.99999974E-6 : f32
    %37 = vector.broadcast %cst_14 : f32 to vector<8x1xf32>
    %38 = arith.addf %34, %37 : vector<8x1xf32>
    %39 = math.rsqrt %38 : vector<8x1xf32>
    %40 = vector.broadcast %39 : vector<8x1xf32> to vector<8x64xf32>
    %41 = arith.mulf %36, %40 : vector<8x64xf32>
    %42 = vector.broadcast %2 : vector<8x1xf32> to vector<8x64xf32>
    %43 = arith.mulf %41, %42 : vector<8x64xf32>
    %44 = vector.broadcast %3 : vector<8x1xf32> to vector<8x64xf32>
    %45 = arith.addf %43, %44 : vector<8x64xf32>
    %c0_15 = arith.constant 0 : index
    %c0_16 = arith.constant 0 : index
    %c0_17 = arith.constant 0 : index
    %46 = vector.load %arg4[%c0_15, %c0_16, %c0_17] : memref<2x8x64xf32, #tpu.memory_space<vmem>>, vector<1x8x64xf32>
    %47 = vector.shape_cast %46 : vector<1x8x64xf32> to vector<8x64xf32>
    %48 = vector.shape_cast %45 : vector<8x64xf32> to vector<1x8x64xf32>
    tpu.vector_store %arg4[%c0_15, %c0_16, %c0_17], %48 {strides = array<i32>} : memref<2x8x64xf32, #tpu.memory_space<vmem>>, vector<1x8x64xf32>,
    %49 = vector.extract_strided_slice %22 {offsets = [0, 64], sizes = [8, 64], strides = [1, 1]} : vector<8x128xf32> to vector<8x64xf32>
    %cst_18 = arith.constant dense<0.000000e+00> : vector<8xf32>
    %50 = vector.multi_reduction <add>, %49, %cst_18 [1] : vector<8x64xf32> to vector<8xf32>
    %51 = vector.shape_cast %50 : vector<8xf32> to vector<8x1xf32>
    %cst_19 = arith.constant 6.400000e+01 : f32
    %52 = vector.broadcast %cst_19 : f32 to vector<8x1xf32>
    %53 = arith.divf %51, %52 : vector<8x1xf32>
    %54 = vector.broadcast %53 : vector<8x1xf32> to vector<8x64xf32>
    %55 = arith.subf %49, %54 : vector<8x64xf32>
    %56 = arith.mulf %55, %55 : vector<8x64xf32>
    %cst_20 = arith.constant dense<0.000000e+00> : vector<8xf32>
    %57 = vector.multi_reduction <add>, %56, %cst_20 [1] : vector<8x64xf32> to vector<8xf32>
    %58 = vector.shape_cast %57 : vector<8xf32> to vector<8x1xf32>
    %cst_21 = arith.constant 6.400000e+01 : f32
    %59 = vector.broadcast %cst_21 : f32 to vector<8x1xf32>
    %60 = arith.divf %58, %59 : vector<8x1xf32>
    %61 = vector.broadcast %53 : vector<8x1xf32> to vector<8x64xf32>
    %62 = arith.subf %49, %61 : vector<8x64xf32>
    %cst_22 = arith.constant 9.99999974E-6 : f32
    %63 = vector.broadcast %cst_22 : f32 to vector<8x1xf32>
    %64 = arith.addf %60, %63 : vector<8x1xf32>
    %65 = math.rsqrt %64 : vector<8x1xf32>
    %66 = vector.broadcast %65 : vector<8x1xf32> to vector<8x64xf32>
    %67 = arith.mulf %62, %66 : vector<8x64xf32>
    %68 = vector.broadcast %2 : vector<8x1xf32> to vector<8x64xf32>
    %69 = arith.mulf %67, %68 : vector<8x64xf32>
    %70 = vector.broadcast %3 : vector<8x1xf32> to vector<8x64xf32>
    %71 = arith.addf %69, %70 : vector<8x64xf32>
    %c1 = arith.constant 1 : index
    %c0_23 = arith.constant 0 : index
    %c0_24 = arith.constant 0 : index
    %72 = vector.load %arg4[%c1, %c0_23, %c0_24] : memref<2x8x64xf32, #tpu.memory_space<vmem>>, vector<1x8x64xf32>
    %73 = vector.shape_cast %72 : vector<1x8x64xf32> to vector<8x64xf32>
    %74 = vector.shape_cast %71 : vector<8x64xf32> to vector<1x8x64xf32>
    tpu.vector_store %arg4[%c1, %c0_23, %c0_24], %74 {strides = array<i32>} : memref<2x8x64xf32, #tpu.memory_space<vmem>>, vector<1x8x64xf32>,
    return
  }
  func.func @transform_0(%arg0: i32) -> (i32, i32) {
    %c0_i32 = arith.constant 0 : i32
    %c0_i32_0 = arith.constant 0 : i32
    return %c0_i32, %arg0 : i32, i32
  }
  func.func @transform_1(%arg0: i32) -> (i32, i32) {
    %c0_i32 = arith.constant 0 : i32
    %c0_i32_0 = arith.constant 0 : i32
    %c0_i32_1 = arith.constant 0 : i32
    return %c0_i32, %c0_i32_0 : i32, i32
  }
  func.func @transform_2(%arg0: i32) -> (i32, i32) {
    %c0_i32 = arith.constant 0 : i32
    %c0_i32_0 = arith.constant 0 : i32
    %c0_i32_1 = arith.constant 0 : i32
    return %c0_i32, %c0_i32_0 : i32, i32
  }
  func.func @transform_3(%arg0: i32) -> (i32, i32, i32) {
    %c0_i32 = arith.constant 0 : i32
    %c0_i32_0 = arith.constant 0 : i32
    %c0_i32_1 = arith.constant 0 : i32
    return %arg0, %c0_i32, %c0_i32_0 : i32, i32, i32
  }
}

</mosaic_0001>

<llo_original>
// kernel: conv_pool.1
$region0: #{conv_pool.1}
  #allocation0 [shape = 'u32[]', space=smem, size = 0x4, offset = 0x4, fixed_abs, tag = 'smem constant byte address 0x4 - core index']
  #allocation1 [shape = 'u32[144,128]{1,0:T(1,128)}', space=vmem, size = 0x12000, scoped, tag = 'internal scratch']
  %s0 = inlined_call_operand.vmem [shape: f32[72,128], index: 0, kind: input, shape index: {}]
  %s1 = inlined_call_operand.vmem [shape: f32[8,72], index: 1, kind: input, shape index: {}]
  %s2 = inlined_call_operand.vmem [shape: f32[8,3], index: 2, kind: input, shape index: {}]
  %s3 = inlined_call_operand.vmem [shape: f32[2,8,64], index: 3, kind: output, shape index: {}]
  %s4 = sld [smem:[#allocation0]]
  $region22: #{conv_pool.1} parent=0
    _
  %s6 = ssub.s32 1, %s4
  %s7 = scalar_select 0, %s6, %s4
  // Predicated region
  $region2: #{conv_pool.1} parent=0 // pred_check
    _
  $region3: #{conv_pool.1} parent=0 // pred_check_branch
    %9 = sbr.rel (0) target = $region5
  $region4: #{conv_pool.1} parent=0 // pred_region
    _
  $region5: #{conv_pool.1} parent=0 // pred_fallthru
    _
  // Predicated region
  $region6: #{conv_pool.1} parent=0 // pred_check
    _
  $region7: #{conv_pool.1} parent=0 // pred_check_branch
    %11 = sbr.rel (0) target = $region9
  $region8: #{conv_pool.1} parent=0 // pred_region
    _
  $region9: #{conv_pool.1} parent=0 // pred_fallthru
    _
  // Predicated region
  $region10: #{conv_pool.1} parent=0 // pred_check
    _
  $region11: #{conv_pool.1} parent=0 // pred_check_branch
    %13 = sbr.rel (0) target = $region13
  $region12: #{conv_pool.1} parent=0 // pred_region
    _
  $region13: #{conv_pool.1} parent=0 // pred_fallthru
    _
  %v14 = vld [vmem:[%s2] sm:$0xff]
  %v15 = vld [vmem:[%s1] sm:$0xff]
  %v16 = vld [vmem:[%s0] sm:$0xff]
  %v17 = vld [vmem:[%s0 + $0x8] sm:$0xff]
  %v18 = vld [vmem:[%s0 + $0x10] sm:$0xff]
  %v19 = vld [vmem:[%s0 + $0x18] sm:$0xff]
  %v20 = vld [vmem:[%s0 + $0x20] sm:$0xff]
  %v21 = vld [vmem:[%s0 + $0x28] sm:$0xff]
  %v22 = vld [vmem:[%s0 + $0x30] sm:$0xff]
  %v23 = vld [vmem:[%s0 + $0x38] sm:$0xff]
  %v24 = vld [vmem:[%s0 + $0x40] sm:$0xff]
  %26 = vset.pattern.permute.xlu0 0
  %27 = vperm.xlu0 %26, %v14
  %v28 = vpop.permute.xlu0 %27
  %vm30 = vcmask 588800
  %v32 = vsel %vm30, %v15, 0
  %34 = vmatprep.subr.mxu0 0.0
  %35 = vmatpush1.msra.mxu0 %v16
  %36 = vmatprep.subr.mxu0 0.0
  %37 = vmatpush1.msra.mxu0 %v17
  %38 = vmatprep.subr.mxu0 0.0
  %39 = vmatpush1.msra.mxu0 %v18
  %40 = vmatprep.subr.mxu0 0.0
  %41 = vmatpush1.msra.mxu0 %v19
  %42 = vmatprep.subr.mxu0 0.0
  %43 = vmatpush1.msra.mxu0 %v20
  %44 = vmatprep.subr.mxu0 0.0
  %45 = vmatpush1.msra.mxu0 %v21
  %46 = vmatprep.subr.mxu0 0.0
  %47 = vmatpush1.msra.mxu0 %v22
  %48 = vmatprep.subr.mxu0 0.0
  %49 = vmatpush1.msra.mxu0 %v23
  %50 = vmatprep.subr.mxu0 0.0
  %51 = vmatpush1.msra.mxu0 %v24
  %52 = vmatprep.subr.mxu0 0.0
  %53 = vmatpush1.msra.mxu0 0.0
  %54 = vmatprep.subr.mxu0 0.0
  %55 = vmatpush1.msra.mxu0 0.0
  %56 = vmatprep.subr.mxu0 0.0
  %57 = vmatpush1.msra.mxu0 0.0
  %58 = vmatprep.subr.mxu0 0.0
  %59 = vmatpush1.msra.mxu0 0.0
  %60 = vmatprep.subr.mxu0 0.0
  %61 = vmatpush1.msra.mxu0 0.0
  %62 = vmatprep.subr.mxu0 0.0
  %63 = vmatpush1.msra.mxu0 0.0
  %64 = vmatprep.subr.mxu0 0.0
  %65 = vmatpush1.msra.mxu0 0.0
  %66 = vmatprep.subr.mxu0 0.0
  %67 = vmatpush1.msra.mxu0 0.0
  %68 = vmatprep.subr.mxu0 0.0
  %69 = vmatpush1.msra.mxu0 0.0
  %70 = vmatprep.subr.mxu0 0.0
  %71 = vmatpush1.msra.mxu0 0.0
  %72 = vmatprep.subr.mxu0 0.0
  %73 = vmatpush1.msra.mxu0 0.0
  %74 = vmatprep.subr.mxu0 0.0
  %75 = vmatpush1.msra.mxu0 0.0
  %76 = vmatprep.subr.mxu0 0.0
  %77 = vmatpush1.msra.mxu0 0.0
  %78 = vmatprep.subr.mxu0 0.0
  %79 = vmatpush1.msra.mxu0 0.0
  %80 = vmatprep.subr.mxu0 0.0
  %81 = vmatpush1.msra.mxu0 0.0
  %82 = vmatprep.subr.mxu0 0.0
  %83 = vmatpush1.msra.mxu0 0.0
  %84 = vmatprep.subr.mxu0 0.0
  %85 = vmatpush1.msra.mxu0 0.0
  %86 = vmatprep.subr.mxu0 0.0
  %87 = vmatpush1.msra.mxu0 0.0
  %88 = vmatprep.subr.mxu0 0.0
  %89 = vmatpush1.msra.mxu0 0.0
  %90 = vmatprep.subr.mxu0 0.0
  %91 = vmatpush1.msra.mxu0 0.0
  %92 = vmatprep.subr.mxu0 0.0
  %93 = vmatpush1.msra.mxu0 0.0
  %94 = vmatprep.subr.mxu0 0.0
  %95 = vmatpush1.msra.mxu0 0.0
  %96 = vmatprep.subr.mxu0 0.0
  %97 = vmatpush1.msra.mxu0 0.0
  %98 = vmatprep.mubr.f32.mxu0 0.0
  %99 = vmatmul.mubr.f32.gmra.mrb[0].mxu0 %v32
  %v100 = vpop.f32.mrb[0].mxu0
  %v101 = vadd.f32 %v28, %v100
  %v102 = vpop.f32.mrb[0].mxu0
  %103 = vdwg.mxu0
  %v104 = vmin.f32 %v101, 40.0
  %v105 = vmul.f32 %v104, 1.442695
  %v106 = vpow.pop %v105
  %v107 = vadd.f32 %v106, 1.0
  %v108 = vmul.f32 %v107, %v107
  %v109 = vsub.f32 %v108, 1.0
  %v110 = vadd.f32 %v108, 1.0
  %v111 = vrcp.pop %v110
  %v112 = vmul.f32 %v109, %v111
  %v113 = vmul.f32 %v101, %v112
  %vm114 = vcmask 523264
  %v115 = vsel %vm114, %v113, 0.0
  %116 = vadd.xlane.f32.xlu0 %v115
  %v117 = vpop.xlane.xlu0 %116
  %v118 = vrcp.pop 64.0
  %v119 = vmul.f32 %v117, %v118
  %v120 = vsub.f32 %v113, %v119
  %v121 = vmul.f32 %v120, %v120
  %v122 = vsel %vm114, %v121, 0.0
  %123 = vadd.xlane.f32.xlu0 %v122
  %v124 = vpop.xlane.xlu0 %123
  %v125 = vmul.f32 %v124, %v118
  %v126 = vadd.f32 %v125, 1e-05
  %v127 = vrsqrt.pop %v126
  %v128 = vmul.f32 %v120, %v127
  %129 = vset.pattern.permute.xlu0 1
  %130 = vperm.xlu0 %129, %v14
  %v131 = vpop.permute.xlu0 %130
  %v133 = vmul.f32 %v128, %v131
  %134 = vset.pattern.permute.xlu0 2
  %135 = vperm.xlu0 %134, %v14
  %v136 = vpop.permute.xlu0 %135
  %v138 = vadd.f32 %v133, %v136
  %139 = vst.msk [vmem:[%s3] sm:$0xff] %vm114, %v138
  %141 = vrot.lane.b32.xlu0 %v113, 64
  %v142 = vpop.permute.xlu0 %141
  %v144 = vsel %vm114, %v142, 0.0
  %145 = vadd.xlane.f32.xlu0 %v144
  %v146 = vpop.xlane.xlu0 %145
  %v147 = vmul.f32 %v146, %v118
  %v148 = vsub.f32 %v113, %v147
  %v149 = vmul.f32 %v148, %v148
  %151 = vrot.lane.b32.xlu0 %v149, 64
  %v152 = vpop.permute.xlu0 %151
  %v154 = vsel %vm114, %v152, 0.0
  %155 = vadd.xlane.f32.xlu0 %v154
  %v156 = vpop.xlane.xlu0 %155
  %v157 = vmul.f32 %v156, %v118
  %v158 = vadd.f32 %v157, 1e-05
  %v159 = vrsqrt.pop %v158
  %v160 = vmul.f32 %v148, %v159
  %v161 = vmul.f32 %v160, %v131
  %v162 = vadd.f32 %v161, %v136
  %164 = vrot.lane.b32.xlu0 %v162, 64
  %v165 = vpop.permute.xlu0 %164
  %s167 = scalar_lea.vmem %s3, 8
  %168 = vst.msk [vmem:[%s167] sm:$0xff] %vm114, %v165
  // Predicated region
  $region14: #{conv_pool.1} parent=0 // pred_check
    _
  $region15: #{conv_pool.1} parent=0 // pred_check_branch
    %170 = sbr.rel (0) target = $region17
  $region16: #{conv_pool.1} parent=0 // pred_region
    _
  $region17: #{conv_pool.1} parent=0 // pred_fallthru
    _
  // Predicated region
  $region18: #{conv_pool.1} parent=0 // pred_check
    _
  $region19: #{conv_pool.1} parent=0 // pred_check_branch
    %172 = sbr.rel (0) target = $region21
  $region20: #{conv_pool.1} parent=0 // pred_region
    _
  $region21: #{conv_pool.1} parent=0 // pred_fallthru
    _

</llo_original>
